<compile_context>
chip_gen: v7x
topology: tpu7x:2x2x1
jax: 0.10.0
libtpu: 0.0.40
codegen_flags: <defaults>
</compile_context>

<pallas_src>
import functools
import math

import numpy as np
import jax
import jax.numpy as jnp
from jax.experimental import pallas as pl
from jax.experimental.pallas import tpu as pltpu

# ---------------------------------------------------------------------------
# Synthetic geometry (small, consistent): range / voxel size / BEV grid.
# ---------------------------------------------------------------------------
PC_RANGE = np.array([0.0, -3.2, -3.0, 6.4, 3.2, 1.0], np.float32)
VOXEL_SIZE = np.array([0.8, 0.8, 4.0], np.float32)
GRID = [8, 8, 1]                      # base BEV grid (x, y, z)

_ROW_TILE = 1024                      # large row tiles (mem-bound row-wise ops)


def _padded_rows(n):
    n8 = ((n + 7) // 8) * 8
    if n8 <= _ROW_TILE:
        return n8
    return ((n8 + _ROW_TILE - 1) // _ROW_TILE) * _ROW_TILE


def _pad_to(x, rows):
    n = x.shape[0]
    if rows == n:
        return x
    return jnp.concatenate(
        [x, jnp.zeros((rows - n,) + x.shape[1:], x.dtype)], axis=0)


# ---------------------------------------------------------------------------
# Fused linear kernel:  [input affine (+ReLU)] -> bf16 MXU dot [+bias]
#                       [-> ReLU] [-> masked per-tile BN stat partials]
#                       [-> emit pre-dot activation]
# ---------------------------------------------------------------------------
def _linear_kernel(*refs, has_affine, has_bias, pre_relu, post_relu, stats,
                   return_pre):
    it = iter(refs)
    x_ref = next(it)
    w_ref = next(it)
    ps_ref = next(it) if has_affine else None
    pb_ref = next(it) if has_affine else None
    b_ref = next(it) if has_bias else None
    m_ref = next(it) if stats else None
    y_ref = next(it)
    s1_ref = next(it) if stats else None
    s2_ref = next(it) if stats else None
    pre_ref = next(it) if return_pre else None

    x = x_ref[...]
    if has_affine:
        x = x * ps_ref[...] + pb_ref[...]
    if pre_relu:
        x = jnp.maximum(x, 0.0)
    y = jnp.dot(x.astype(jnp.bfloat16), w_ref[...],
                preferred_element_type=jnp.float32)
    if has_bias:
        y = y + b_ref[...]
    if post_relu:
        y = jnp.maximum(y, 0.0)
    y_ref[...] = y
    if return_pre:
        pre_ref[...] = x
    if stats:
        ym = y * m_ref[...]
        s1_ref[0] = jnp.sum(ym, axis=0, keepdims=True)
        s2_ref[0] = jnp.sum(ym * y, axis=0, keepdims=True)


def linear(x, w, *, bias=None, pre_scale=None, pre_shift=None, pre_relu=False,
           relu=False, stats=False, mask=None, return_pre=False):
    """x: (N, Cin), w: (Cin, Cout).  Fused (affine->relu)->matmul(bf16)->bias->relu.

    stats=True additionally returns masked per-channel (sum, sumsq) of the
    output (for the following BatchNorm); return_pre=True also returns the
    pre-dot activation (used to materialize the pre_mlp output together with
    the score projection)."""
    assert not (stats and return_pre)
    n, cin = x.shape
    cout = w.shape[1]
    rows = _padded_rows(n)
    tile = min(_ROW_TILE, rows)
    grid = rows // tile

    x = _pad_to(x.astype(jnp.float32), rows)
    has_affine = (pre_scale is not None) or (pre_shift is not None)
    has_bias = bias is not None

    args = [x, w.astype(jnp.bfloat16)]
    in_specs = [pl.BlockSpec((tile, cin), lambda i: (i, 0)),
                pl.BlockSpec((cin, cout), lambda i: (0, 0))]
    if has_affine:
        ps = (jnp.ones((1, cin), jnp.float32) if pre_scale is None
              else pre_scale.reshape(1, cin).astype(jnp.float32))
        pb = (jnp.zeros((1, cin), jnp.float32) if pre_shift is None
              else pre_shift.reshape(1, cin).astype(jnp.float32))
        args += [ps, pb]
        in_specs += [pl.BlockSpec((1, cin), lambda i: (0, 0)),
                     pl.BlockSpec((1, cin), lambda i: (0, 0))]
    if has_bias:
        args.append(bias.reshape(1, cout).astype(jnp.float32))
        in_specs.append(pl.BlockSpec((1, cout), lambda i: (0, 0)))
    if stats:
        if mask is None:
            m = jnp.ones((rows, 1), jnp.float32)
        else:
            m = _pad_to(mask.reshape(-1, 1).astype(jnp.float32), rows)
        args.append(m)
        in_specs.append(pl.BlockSpec((tile, 1), lambda i: (i, 0)))

    out_shape = [jax.ShapeDtypeStruct((rows, cout), jnp.float32)]
    out_specs = [pl.BlockSpec((tile, cout), lambda i: (i, 0))]
    if stats:
        out_shape += [jax.ShapeDtypeStruct((grid, 1, cout), jnp.float32)] * 2
        out_specs += [pl.BlockSpec((1, 1, cout), lambda i: (i, 0, 0))] * 2
    if return_pre:
        out_shape.append(jax.ShapeDtypeStruct((rows, cin), jnp.float32))
        out_specs.append(pl.BlockSpec((tile, cin), lambda i: (i, 0)))

    kern = functools.partial(_linear_kernel, has_affine=has_affine,
                             has_bias=has_bias, pre_relu=pre_relu,
                             post_relu=relu, stats=stats,
                             return_pre=return_pre)
    res = pl.pallas_call(
        kern, out_shape=tuple(out_shape), grid=(grid,),
        in_specs=in_specs, out_specs=tuple(out_specs),
        compiler_params=pltpu.CompilerParams(
            dimension_semantics=("parallel",)),
    )(*args)

    if stats:
        y, s1, s2 = res
        return y[:n], jnp.sum(s1, axis=0)[0], jnp.sum(s2, axis=0)[0]
    if return_pre:
        y, pre = res
        return y[:n], pre[:n]
    y = res[0] if isinstance(res, (tuple, list)) else res
    return y[:n]


# ---------------------------------------------------------------------------
# Row-tiled affine (+ReLU): BatchNorm apply when it cannot be fused forward.
# ---------------------------------------------------------------------------
def _affine_kernel(x_ref, s_ref, b_ref, o_ref, *, relu):
    y = x_ref[...] * s_ref[...] + b_ref[...]
    if relu:
        y = jnp.maximum(y, 0.0)
    o_ref[...] = y


def affine(x, scale, shift, relu=False):
    n, c = x.shape
    rows = _padded_rows(n)
    tile = min(_ROW_TILE, rows)
    xp = _pad_to(x.astype(jnp.float32), rows)
    out = pl.pallas_call(
        functools.partial(_affine_kernel, relu=relu),
        out_shape=jax.ShapeDtypeStruct((rows, c), jnp.float32),
        grid=(rows // tile,),
        in_specs=[pl.BlockSpec((tile, c), lambda i: (i, 0)),
                  pl.BlockSpec((1, c), lambda i: (0, 0)),
                  pl.BlockSpec((1, c), lambda i: (0, 0))],
        out_specs=pl.BlockSpec((tile, c), lambda i: (i, 0)),
        compiler_params=pltpu.CompilerParams(
            dimension_semantics=("parallel",)),
    )(xp, scale.reshape(1, c).astype(jnp.float32),
      shift.reshape(1, c).astype(jnp.float32))
    return out[:n]


def _bn_scale_shift(ssum, ssq, count, gamma, beta, eps):
    mean = ssum / count
    var = jnp.maximum(ssq / count - mean * mean, 0.0)
    scale = gamma * jax.lax.rsqrt(var + eps)
    shift = beta - mean * scale
    return scale, shift


# ---------------------------------------------------------------------------
# Fused Fourier positional encoding: sin/cos generated in-kernel from the raw
# (N, 3) voxel fractions, projected (bf16 MXU) and added to src in one pass.
# ---------------------------------------------------------------------------
def _pe_kernel(src_ref, pe_ref, invt_ref, w_ref, b_ref, o_ref, *, hidden):
    scale = 2.0 * math.pi / (1.0 + 1e-6)
    emb = pe_ref[...] * scale                          # (T, 3)
    parity = jax.lax.broadcasted_iota(jnp.int32, (1, hidden), 1) % 2
    invt = invt_ref[...]                               # (1, hidden)
    acc = None
    for c in range(3):
        p = emb[:, c:c + 1] * invt                     # (T, hidden)
        enc = jnp.where(parity == 0, jnp.sin(p), jnp.cos(p))
        part = jnp.dot(enc.astype(jnp.bfloat16),
                       w_ref[c * hidden:(c + 1) * hidden, :],
                       preferred_element_type=jnp.float32)
        acc = part if acc is None else acc + part
    o_ref[...] = src_ref[...] + acc + b_ref[...]


def fourier_pe_add(src, pe_raw, w, b, hidden_dim=64):
    """Returns src + Linear(FourierPE(pe_raw)); everything fused per row tile."""
    n, d = src.shape
    rows = _padded_rows(n)
    tile = min(_ROW_TILE, rows)
    srcp = _pad_to(src.astype(jnp.float32), rows)
    pep = _pad_to(pe_raw.astype(jnp.float32), rows)
    t = jnp.arange(hidden_dim, dtype=jnp.float32)
    dim_t = 10000.0 ** (2.0 * jnp.floor(t / 2.0) / hidden_dim)
    inv_t = (1.0 / dim_t).reshape(1, hidden_dim)
    out = pl.pallas_call(
        functools.partial(_pe_kernel, hidden=hidden_dim),
        out_shape=jax.ShapeDtypeStruct((rows, d), jnp.float32),
        grid=(rows // tile,),
        in_specs=[pl.BlockSpec((tile, d), lambda i: (i, 0)),
                  pl.BlockSpec((tile, 3), lambda i: (i, 0)),
                  pl.BlockSpec((1, hidden_dim), lambda i: (0, 0)),
                  pl.BlockSpec((3 * hidden_dim, d), lambda i: (0, 0)),
                  pl.BlockSpec((1, d), lambda i: (0, 0))],
        out_specs=pl.BlockSpec((tile, d), lambda i: (i, 0)),
        compiler_params=pltpu.CompilerParams(
            dimension_semantics=("parallel",)),
    )(srcp, pep, inv_t, w.astype(jnp.bfloat16),
      b.reshape(1, d).astype(jnp.float32))
    return out[:n]


# ---------------------------------------------------------------------------
# Fused single-head attention: q projection, per-latent fused k|v projection
# (norm-BN affine folded into the (d, 2d) weight), softmax over k latents,
# output projection.  h comes in as (k, N, d) so each latent is a contiguous
# first-axis block -- no kron weights, no unaligned latent slices.
# ---------------------------------------------------------------------------
def _mhsa_kernel(x_ref, h_ref, wq_ref, bq_ref, wkv_ref, bkv_ref, wo_ref,
                 bo_ref, o_ref, *, k, d):
    x = x_ref[...]                                               # (T, d)
    q = jnp.dot(x.astype(jnp.bfloat16), wq_ref[...],
                preferred_element_type=jnp.float32) + bq_ref[...]
    scale = 1.0 / math.sqrt(d)
    ss, vs = [], []
    for j in range(k):
        hj = h_ref[j]                                            # (T, d)
        kvj = jnp.dot(hj.astype(jnp.bfloat16), wkv_ref[...],
                      preferred_element_type=jnp.float32) + bkv_ref[...]
        ss.append(jnp.sum(q * kvj[:, :d], axis=-1, keepdims=True) * scale)
        vs.append(kvj[:, d:])
    m = ss[0]
    for j in range(1, k):
        m = jnp.maximum(m, ss[j])
    den = jnp.zeros_like(m)
    num = jnp.zeros_like(q)
    for j in range(k):
        p = jnp.exp(ss[j] - m)
        den = den + p
        num = num + p * vs[j]
    o = num * pl.reciprocal(den, approx=True)
    o_ref[...] = (jnp.dot(o.astype(jnp.bfloat16), wo_ref[...],
                          preferred_element_type=jnp.float32) + bo_ref[...])


def fused_attention(x, h_kt, wq, bq, wkv, bkv, wo, bo, k, d):
    """x: (N, d) queries, h_kt: (k, N, d) latent features (pre-norm; norm BN
    affine already folded into wkv/bkv)."""
    n = x.shape[0]
    rows = _padded_rows(n)
    tile = min(_ROW_TILE, rows)
    xp = _pad_to(x.astype(jnp.float32), rows)
    hp = h_kt.astype(jnp.float32)
    if hp.shape[1] != rows:
        hp = jnp.concatenate(
            [hp, jnp.zeros((k, rows - hp.shape[1], d), jnp.float32)], axis=1)
    out = pl.pallas_call(
        functools.partial(_mhsa_kernel, k=k, d=d),
        out_shape=jax.ShapeDtypeStruct((rows, d), jnp.float32),
        grid=(rows // tile,),
        in_specs=[pl.BlockSpec((tile, d), lambda i: (i, 0)),
                  pl.BlockSpec((k, tile, d), lambda i: (0, i, 0)),
                  pl.BlockSpec((d, d), lambda i: (0, 0)),
                  pl.BlockSpec((1, d), lambda i: (0, 0)),
                  pl.BlockSpec((d, 2 * d), lambda i: (0, 0)),
                  pl.BlockSpec((1, 2 * d), lambda i: (0, 0)),
                  pl.BlockSpec((d, d), lambda i: (0, 0)),
                  pl.BlockSpec((1, d), lambda i: (0, 0))],
        out_specs=pl.BlockSpec((tile, d), lambda i: (i, 0)),
        compiler_params=pltpu.CompilerParams(
            dimension_semantics=("parallel",)),
    )(xp, hp,
      wq.astype(jnp.bfloat16), bq.astype(jnp.float32),
      wkv.astype(jnp.bfloat16), bkv.astype(jnp.float32),
      wo.astype(jnp.bfloat16), bo.astype(jnp.float32))
    return out[:n]


# ---------------------------------------------------------------------------
# Depthwise 3x3 BEV conv, padding=1 handled in-kernel (VMEM scratch halo),
# optional fused pre BN-affine + ReLU on the input, per-batch BN2d stat
# partials.
# ---------------------------------------------------------------------------
def _dwconv_kernel(*refs, H, W, C, pre_affine):
    if pre_affine:
        x_ref, s_ref, b_ref, w_ref, y_ref, s1_ref, s2_ref, pad_ref = refs
    else:
        x_ref, w_ref, y_ref, s1_ref, s2_ref, pad_ref = refs
    x = x_ref[0]                              # (H, W, C)
    if pre_affine:
        x = jnp.maximum(x * s_ref[...] + b_ref[...], 0.0)
    # in-kernel zero halo (pad-after-activation semantics preserved)
    pad_ref[...] = jnp.zeros_like(pad_ref)
    pad_ref[1:H + 1, 1:W + 1, :] = x
    xp = pad_ref[...]
    w = w_ref[...]                            # (3, 3, C)
    acc = jnp.zeros((H, W, C), jnp.float32)
    for di in range(3):
        for dj in range(3):
            acc = acc + xp[di:di + H, dj:dj + W, :] * w[di, dj, :]
    y_ref[0] = acc
    s1_ref[0] = jnp.sum(jnp.sum(acc, axis=0), axis=0)[None, :]
    s2_ref[0] = jnp.sum(jnp.sum(acc * acc, axis=0), axis=0)[None, :]


def depthwise3x3(x, w, pre_scale=None, pre_shift=None):
    """x: (B,H,W,C) NHWC, w: (3,3,C).  Optional fused input BN-affine+ReLU.
    Returns (y, channel_sum, channel_sumsq) for the following BatchNorm2d."""
    b, h, wd, c = x.shape
    pre_affine = pre_scale is not None
    args = [x.astype(jnp.float32)]
    in_specs = [pl.BlockSpec((1, h, wd, c), lambda i: (i, 0, 0, 0))]
    if pre_affine:
        args += [pre_scale.reshape(1, 1, c).astype(jnp.float32),
                 pre_shift.reshape(1, 1, c).astype(jnp.float32)]
        in_specs += [pl.BlockSpec((1, 1, c), lambda i: (0, 0, 0)),
                     pl.BlockSpec((1, 1, c), lambda i: (0, 0, 0))]
    args.append(w.astype(jnp.float32))
    in_specs.append(pl.BlockSpec((3, 3, c), lambda i: (0, 0, 0)))
    y, s1, s2 = pl.pallas_call(
        functools.partial(_dwconv_kernel, H=h, W=wd, C=c,
                          pre_affine=pre_affine),
        out_shape=(jax.ShapeDtypeStruct((b, h, wd, c), jnp.float32),
                   jax.ShapeDtypeStruct((b, 1, c), jnp.float32),
                   jax.ShapeDtypeStruct((b, 1, c), jnp.float32)),
        grid=(b,),
        in_specs=in_specs,
        out_specs=(pl.BlockSpec((1, h, wd, c), lambda i: (i, 0, 0, 0)),
                   pl.BlockSpec((1, 1, c), lambda i: (i, 0, 0)),
                   pl.BlockSpec((1, 1, c), lambda i: (i, 0, 0))),
        scratch_shapes=[pltpu.VMEM((h + 2, wd + 2, c), jnp.float32)],
        compiler_params=pltpu.CompilerParams(
            dimension_semantics=("parallel",)),
    )(*args)
    return y, jnp.sum(s1, axis=0)[0], jnp.sum(s2, axis=0)[0]


# ---------------------------------------------------------------------------
# Glue: voxelization, VSA layer, full forward
# ---------------------------------------------------------------------------
def voxelize(points_np, voxel_size):
    """torch.unique(...)-style voxelization on host (data-dependent)."""
    offsets = points_np[:, 1:4] - PC_RANGE[:3]
    vox = np.floor(offsets / voxel_size)
    coords = np.concatenate([points_np[:, :1], vox], axis=1).astype(np.float32)
    uniq, inv = np.unique(coords, axis=0, return_inverse=True)
    inv = inv.reshape(-1).astype(np.int32)
    b_idx = uniq[:, 0].astype(np.int32)
    i_idx = uniq[:, 1].astype(np.int32)
    j_idx = uniq[:, 2].astype(np.int32)
    return (b_idx, i_idx, j_idx), inv


def mlp_vsa_layer(p, inp, inverse, vox_idx, bev_shape, dim, k, batch_size,
                  mask, n_valid):
    b_idx, i_idx, j_idx = vox_idx
    m_vox = int(b_idx.shape[0])
    conv_dim = dim * k
    bs0, bs1 = int(bev_shape[0]), int(bev_shape[1])
    n_pad = inp.shape[0]

    # ---- pre_mlp: (conv -> BN -> ReLU) x2 -> conv -> BN (BN applies fused
    # into the following matmul; BN stat partials ride each matmul). ----
    y0, s0, q0 = linear(inp, p['pre_w'][0], stats=True, mask=mask)
    sc0, sh0 = _bn_scale_shift(s0, q0, n_valid, p['pre_g'][0], p['pre_b'][0], 1e-3)
    y1, s1, q1 = linear(y0, p['pre_w'][1], pre_scale=sc0, pre_shift=sh0,
                        pre_relu=True, stats=True, mask=mask)
    sc1, sh1 = _bn_scale_shift(s1, q1, n_valid, p['pre_g'][1], p['pre_b'][1], 1e-3)
    y2, s2, q2 = linear(y1, p['pre_w'][2], pre_scale=sc1, pre_shift=sh1,
                        pre_relu=True, stats=True, mask=mask)
    sc2, sh2 = _bn_scale_shift(s2, q2, n_valid, p['pre_g'][2], p['pre_b'][2], 1e-3)

    # score projection + materialize pre_mlp output x in one kernel
    score, x = linear(y2, p['score_w'], pre_scale=sc2, pre_shift=sh2,
                      return_pre=True)

    # ---- voxel-wise scatter softmax / scatter sum (XLA glue) ----
    seg_max = jax.ops.segment_max(score, inverse, num_segments=m_vox + 1)
    e = jnp.exp(score - seg_max[inverse])
    denom = jax.ops.segment_sum(e, inverse, num_segments=m_vox + 1)
    attn = e / denom[inverse]                                    # (N_pad, k)
    dot = (attn[:, :, None] * x[:, None, :]).reshape(n_pad, conv_dim)
    x_vox = jax.ops.segment_sum(dot, inverse, num_segments=m_vox + 1)[:m_vox]

    # ---- sparse -> dense BEV (spconv .dense().squeeze(-1)), NHWC ----
    dense = jnp.zeros((batch_size, bs0, bs1, conv_dim), jnp.float32)
    dense = dense.at[b_idx, i_idx, j_idx, :].set(jnp.maximum(x_vox, 0.0))
    n_pix = float(batch_size * bs0 * bs1)

    # ---- conv_ffn: dw3x3(+stats) -> [BN+ReLU folded into] dw3x3(+stats)
    #                -> [BN+ReLU folded into] 1x1 conv ----
    h1, d1s, d1q = depthwise3x3(dense, p['dw1'])
    dsc1, dsh1 = _bn_scale_shift(d1s, d1q, n_pix, p['bn1_g'], p['bn1_b'], 1e-5)
    h2, d2s, d2q = depthwise3x3(h1, p['dw2'], pre_scale=dsc1, pre_shift=dsh1)
    dsc2, dsh2 = _bn_scale_shift(d2s, d2q, n_pix, p['bn2_g'], p['bn2_b'], 1e-5)
    hpix = linear(h2.reshape(-1, conv_dim), p['pw_w'],
                  pre_scale=dsc2, pre_shift=dsh2, pre_relu=True)

    # ---- gather back: voxel -> point (XLA glue) ----
    flat_idx = b_idx * (bs0 * bs1) + i_idx * bs1 + j_idx
    h = hpix[flat_idx][inverse]                                  # (N_pad, k*dim)

    # ---- `norm` BN: masked stats (tiny, XLA), affine folded into k/v weights
    hm = h.reshape(n_pad * k, dim)
    w_rows = jnp.repeat(mask, k, axis=0)
    nsum = jnp.sum(hm * w_rows, axis=0)
    nsq = jnp.sum(hm * hm * w_rows, axis=0)
    nsc, nsh = _bn_scale_shift(nsum, nsq, n_valid * k,
                               p['norm_g'], p['norm_b'], 1e-3)
    wk_eff = nsc[:, None] * p['wk']
    bk_eff = p['bk'] + nsh @ p['wk']
    wv_eff = nsc[:, None] * p['wv']
    bv_eff = p['bv'] + nsh @ p['wv']
    wkv = jnp.concatenate([wk_eff, wv_eff], axis=1)              # (d, 2d)
    bkv = jnp.concatenate([bk_eff, bv_eff]).reshape(1, 2 * dim)

    # (k, N, d) layout: each latent contiguous -> clean first-axis loads
    h_kt = jnp.transpose(h.reshape(n_pad, k, dim), (1, 0, 2))

    # ---- fused single-head attention (q/k/v/softmax/out in one kernel) ----
    o = fused_attention(x, h_kt, p['wq'], p['bq'].reshape(1, dim),
                        wkv, bkv, p['wo'], p['bo'].reshape(1, dim), k, dim)
    return jnp.concatenate([inp, o], axis=-1)


def _w(key, shape, scale=None):
    if scale is None:
        scale = 1.0 / math.sqrt(shape[0])
    return scale * jax.random.normal(key, shape, dtype=jnp.float32)


def init_params(key):
    keys = iter(jax.random.split(key, 128))
    p = {}
    p['embed_w0'] = _w(next(keys), (3, 16))
    p['embed_w1'] = _w(next(keys), (16, 3))
    dims = [3, 6, 12, 24]
    for li, d in enumerate(dims):
        k = 8
        cd = d * k
        p[f'pe{li}_w'] = _w(next(keys), (192, d))
        p[f'pe{li}_b'] = jnp.zeros((d,), jnp.float32)
        vp = {
            'pre_w': [_w(next(keys), (d, d)) for _ in range(3)],
            'pre_g': [jnp.ones((d,), jnp.float32) for _ in range(3)],
            'pre_b': [jnp.zeros((d,), jnp.float32) for _ in range(3)],
            'score_w': _w(next(keys), (d, k)),
            'dw1': _w(next(keys), (3, 3, cd), scale=1.0 / 3.0),
            'dw2': _w(next(keys), (3, 3, cd), scale=1.0 / 3.0),
            'bn1_g': jnp.ones((cd,), jnp.float32),
            'bn1_b': jnp.zeros((cd,), jnp.float32),
            'bn2_g': jnp.ones((cd,), jnp.float32),
            'bn2_b': jnp.zeros((cd,), jnp.float32),
            'pw_w': _w(next(keys), (cd, cd)),
            'norm_g': jnp.ones((d,), jnp.float32),
            'norm_b': jnp.zeros((d,), jnp.float32),
            'wq': _w(next(keys), (d, d)), 'bq': jnp.zeros((d,), jnp.float32),
            'wk': _w(next(keys), (d, d)), 'bk': jnp.zeros((d,), jnp.float32),
            'wv': _w(next(keys), (d, d)), 'bv': jnp.zeros((d,), jnp.float32),
            'wo': _w(next(keys), (d, d)), 'bo': jnp.zeros((d,), jnp.float32),
        }
        p[f'vsa{li}'] = vp
    p['post_w'] = [_w(next(keys), (48, 128)),
                   _w(next(keys), (128, 128)),
                   _w(next(keys), (128, 128))]
    p['post_g'] = [jnp.ones((128,), jnp.float32) for _ in range(3)]
    p['post_b'] = [jnp.zeros((128,), jnp.float32) for _ in range(3)]
    return p


def voxset_forward(params, points_np):
    n0 = points_np.shape[0]
    n_pad = _padded_rows(n0)
    pad = n_pad - n0
    batch_size = int(points_np[:, 0].max()) + 1

    # fractional position inside the base voxel (pe_raw)
    offsets_np = points_np[:, 1:4] - PC_RANGE[None, :3]
    vox01_np = np.floor(offsets_np / VOXEL_SIZE)
    pe_raw_np = ((offsets_np - vox01_np * VOXEL_SIZE) / VOXEL_SIZE).astype(np.float32)

    # pad the point dimension ONCE; validity mask protects BN statistics
    if pad:
        points_pad = np.concatenate(
            [points_np, np.zeros((pad, points_np.shape[1]), np.float32)], 0)
        pe_raw_np = np.concatenate([pe_raw_np, np.zeros((pad, 3), np.float32)], 0)
    else:
        points_pad = points_np
    points = jnp.asarray(points_pad, jnp.float32)
    pe_raw = jnp.asarray(pe_raw_np, jnp.float32)
    mask = jnp.concatenate([jnp.ones((n0, 1), jnp.float32),
                            jnp.zeros((pad, 1), jnp.float32)], axis=0)

    scale_grids = [GRID,
                   [GRID[0] // 2, GRID[1] // 2, 1],
                   [GRID[0] // 4, GRID[1] // 4, 1],
                   [GRID[0] // 8, GRID[1] // 8, 1]]
    scale_muls = [1, 2, 4, 8]
    scales = []
    for mul, grid in zip(scale_muls, scale_grids):
        vs = VOXEL_SIZE * np.array([mul, mul, 1], np.float32)
        (b_idx, i_idx, j_idx), inv = voxelize(points_np, vs)
        if pad:   # padded points go to a dummy segment that is later dropped
            inv = np.concatenate(
                [inv, np.full((pad,), b_idx.shape[0], np.int32)])
        scales.append(((jnp.asarray(b_idx), jnp.asarray(i_idx),
                        jnp.asarray(j_idx)), jnp.asarray(inv), grid))

    # input_embed: MLP(3, 16, 3, 2)
    src = linear(points[:, 1:4], params['embed_w0'], relu=True)
    src = linear(src, params['embed_w1'])

    dims = [3, 6, 12, 24]
    for li, d in enumerate(dims):
        src = fourier_pe_add(src, pe_raw, params[f'pe{li}_w'], params[f'pe{li}_b'])
        idxs, inv, grid = scales[li]
        src = mlp_vsa_layer(params[f'vsa{li}'], src, inv, idxs, grid,
                            dim=d, k=8, batch_size=batch_size,
                            mask=mask, n_valid=float(n0))

    # post_mlp (conv->BN->ReLU x2 -> conv->BN) + final ReLU; BN applies fused
    # into the following matmuls, stats ride the matmuls.
    y0, s0, q0 = linear(src, params['post_w'][0], stats=True, mask=mask)
    sc0, sh0 = _bn_scale_shift(s0, q0, float(n0),
                               params['post_g'][0], params['post_b'][0], 1e-3)
    y1, s1, q1 = linear(y0, params['post_w'][1], pre_scale=sc0, pre_shift=sh0,
                        pre_relu=True, stats=True, mask=mask)
    sc1, sh1 = _bn_scale_shift(s1, q1, float(n0),
                               params['post_g'][1], params['post_b'][1], 1e-3)
    y2, s2, q2 = linear(y1, params['post_w'][2], pre_scale=sc1, pre_shift=sh1,
                        pre_relu=True, stats=True, mask=mask)
    sc2, sh2 = _bn_scale_shift(s2, q2, float(n0),
                               params['post_g'][2], params['post_b'][2], 1e-3)
    point_features = affine(y2, sc2, sh2, relu=True)
    return point_features[:n0]


if __name__ == "__main__":
    key = jax.random.PRNGKey(0)
    kp, kx = jax.random.split(key)
    params = init_params(kp)

    n_points = 64
    k1, k2, k3 = jax.random.split(kx, 3)
    xs = jax.random.uniform(k1, (n_points, 1), minval=0.05, maxval=6.35)
    ys = jax.random.uniform(k2, (n_points, 1), minval=-3.15, maxval=3.15)
    zs = jax.random.uniform(k3, (n_points, 1), minval=-2.95, maxval=0.95)
    batch = jnp.concatenate(
        [jnp.zeros((n_points // 2, 1)), jnp.ones((n_points - n_points // 2, 1))],
        axis=0)
    points = jnp.concatenate([batch, xs, ys, zs], axis=1).astype(jnp.float32)
    points_np = np.asarray(points)

    out = voxset_forward(params, points_np)
    out = jax.block_until_ready(out)
    assert out.shape == (n_points, 128), out.shape
    assert np.all(np.isfinite(np.asarray(out)))
    print("KERNEL_OK")
</pallas_src>

<mosaic_0001>
module attributes {stable_mosaic.version = 11 : i64} {
  func.func @_linear_kernel(%arg0: i32, %arg1: memref<64x3xf32, #tpu.memory_space<vmem>>, %arg2: memref<3x16xbf16, #tpu.memory_space<vmem>>, %arg3: memref<64x16xf32, #tpu.memory_space<vmem>>) attributes {dimension_semantics = [#tpu.dimension_semantics<parallel>], iteration_bounds = array<i64: 1>, scalar_prefetch = 0 : i64, scratch_operands = 0 : i64, tpu.core_type = #tpu.core_type<tc>, window_params = [{transform_indices = @transform_0, window_bounds = array<i64: 64, 3>}, {pipeline_mode = #tpu.pipeline_mode<synchronous>, transform_indices = @transform_1, window_bounds = array<i64: 3, 16>}, {transform_indices = @transform_2, window_bounds = array<i64: 64, 16>}]} {
    %c0 = arith.constant 0 : index
    %c0_0 = arith.constant 0 : index
    %0 = vector.load %arg1[%c0, %c0_0] : memref<64x3xf32, #tpu.memory_space<vmem>>, vector<64x3xf32>
    %1 = arith.truncf %0 : vector<64x3xf32> to vector<64x3xbf16>
    %c0_1 = arith.constant 0 : index
    %c0_2 = arith.constant 0 : index
    %2 = vector.load %arg2[%c0_1, %c0_2] : memref<3x16xbf16, #tpu.memory_space<vmem>>, vector<3x16xbf16>
    %cst = arith.constant dense<0.000000e+00> : vector<64x16xf32>
    %3 = tpu.matmul %1, %2, %cst {dimension_numbers = #tpu.dot_dimension_numbers<[1], [0], [0], [1], [0, 0, 1, 1], [], []>} : vector<64x3xbf16>, vector<3x16xbf16>, vector<64x16xf32> -> vector<64x16xf32>
    %cst_3 = arith.constant 0.000000e+00 : f32
    %4 = vector.broadcast %cst_3 : f32 to vector<64x16xf32>
    %5 = arith.maximumf %3, %4 : vector<64x16xf32>
    %c0_4 = arith.constant 0 : index
    %c0_5 = arith.constant 0 : index
    %6 = vector.load %arg3[%c0_4, %c0_5] : memref<64x16xf32, #tpu.memory_space<vmem>>, vector<64x16xf32>
    tpu.vector_store %arg3[%c0_4, %c0_5], %5 {strides = array<i32>} : memref<64x16xf32, #tpu.memory_space<vmem>>, vector<64x16xf32>,
    return
  }
  func.func @transform_0(%arg0: i32) -> (i32, i32) {
    %c0_i32 = arith.constant 0 : i32
    %c0_i32_0 = arith.constant 0 : i32
    return %arg0, %c0_i32 : i32, i32
  }
  func.func @transform_1(%arg0: i32) -> (i32, i32) {
    %c0_i32 = arith.constant 0 : i32
    %c0_i32_0 = arith.constant 0 : i32
    %c0_i32_1 = arith.constant 0 : i32
    return %c0_i32, %c0_i32_0 : i32, i32
  }
  func.func @transform_2(%arg0: i32) -> (i32, i32) {
    %c0_i32 = arith.constant 0 : i32
    %c0_i32_0 = arith.constant 0 : i32
    return %arg0, %c0_i32 : i32, i32
  }
}

</mosaic_0001>

<llo_original>
// kernel: tpu_custom_call.1
$region0: #{tpu_custom_call.1}
  #allocation0 [shape = 'u32[]', space=smem, size = 0x4, offset = 0x4, fixed_abs, tag = 'smem constant byte address 0x4 - core index']
  #allocation1 [shape = 'u32[144,128]{1,0:T(1,128)}', space=vmem, size = 0x12000, scoped, tag = 'internal scratch']
  %s0 = inlined_call_operand.vmem [shape: f32[64,3], index: 0, kind: input, shape index: {}]
  %s1 = inlined_call_operand.vmem [shape: bf16[3,16], index: 1, kind: input, shape index: {}]
  %s2 = inlined_call_operand.vmem [shape: f32[64,16], index: 2, kind: output, shape index: {}]
  %s3 = sld [smem:[#allocation0]]
  $region18: #{tpu_custom_call.1} parent=0
    _
  %s5 = ssub.s32 1, %s3
  %s6 = scalar_select 0, %s5, %s3
  // Predicated region
  $region2: #{tpu_custom_call.1} parent=0 // pred_check
    _
  $region3: #{tpu_custom_call.1} parent=0 // pred_check_branch
    %8 = sbr.rel (0) target = $region5
  $region4: #{tpu_custom_call.1} parent=0 // pred_region
    _
  $region5: #{tpu_custom_call.1} parent=0 // pred_fallthru
    _
  // Predicated region
  $region6: #{tpu_custom_call.1} parent=0 // pred_check
    _
  $region7: #{tpu_custom_call.1} parent=0 // pred_check_branch
    %10 = sbr.rel (0) target = $region9
  $region8: #{tpu_custom_call.1} parent=0 // pred_region
    _
  $region9: #{tpu_custom_call.1} parent=0 // pred_fallthru
    _
  %v12 = vld [vmem:[%s0] sm:$0xff]
  %v13 = vld [vmem:[%s0 + $0x8] sm:$0xff]
  %v14 = vld [vmem:[%s0 + $0x10] sm:$0xff]
  %v15 = vld [vmem:[%s0 + $0x18] sm:$0xff]
  %v16 = vld [vmem:[%s0 + $0x20] sm:$0xff]
  %v17 = vld [vmem:[%s0 + $0x28] sm:$0xff]
  %v18 = vld [vmem:[%s0 + $0x30] sm:$0xff]
  %v19 = vld [vmem:[%s0 + $0x38] sm:$0xff]
  %v20 = vpack.c.bf16 %v13, %v12
  %v21 = vpack.c.bf16 %v15, %v14
  %v22 = vpack.c.bf16 %v17, %v16
  %v23 = vpack.c.bf16 %v19, %v18
  %v24 = vld [vmem:[%s1] sm:$0x3]
  %vm25 = vcmask 23552
  %v27 = vsel %vm25, %v20, 0
  %v30 = vsel %vm25, %v21, 0
  %v33 = vsel %vm25, %v22, 0
  %v36 = vsel %vm25, %v23, 0
  %vm38 = vcmask 1040384
  %vm39 = vcmask 1041408
  %v40 = vsel %vm38, 4294967295, 65535
  %v41 = vsel %vm39, %v40, 0
  %v43 = vand.u32 %v24, %v41
  %45 = vmatprep.subr.bf16.mxu0 0
  %46 = vmatpush1.bf16.msra.mxu0 %v43
  %47 = vmatprep.subr.bf16.mxu0 0
  %48 = vmatpush1.bf16.msra.mxu0 0
  %49 = vmatprep.subr.bf16.mxu0 0
  %50 = vmatpush1.bf16.msra.mxu0 0
  %51 = vmatprep.subr.bf16.mxu0 0
  %52 = vmatpush1.bf16.msra.mxu0 0
  %53 = vmatprep.subr.bf16.mxu0 0
  %54 = vmatpush1.bf16.msra.mxu0 0
  %55 = vmatprep.subr.bf16.mxu0 0
  %56 = vmatpush1.bf16.msra.mxu0 0
  %57 = vmatprep.subr.bf16.mxu0 0
  %58 = vmatpush1.bf16.msra.mxu0 0
  %59 = vmatprep.subr.bf16.mxu0 0
  %60 = vmatpush1.bf16.msra.mxu0 0
  %61 = vmatprep.subr.bf16.mxu0 0
  %62 = vmatpush1.bf16.msra.mxu0 0
  %63 = vmatprep.subr.bf16.mxu0 0
  %64 = vmatpush1.bf16.msra.mxu0 0
  %65 = vmatprep.subr.bf16.mxu0 0
  %66 = vmatpush1.bf16.msra.mxu0 0
  %67 = vmatprep.subr.bf16.mxu0 0
  %68 = vmatpush1.bf16.msra.mxu0 0
  %69 = vmatprep.subr.bf16.mxu0 0
  %70 = vmatpush1.bf16.msra.mxu0 0
  %71 = vmatprep.subr.bf16.mxu0 0
  %72 = vmatpush1.bf16.msra.mxu0 0
  %73 = vmatprep.subr.bf16.mxu0 0
  %74 = vmatpush1.bf16.msra.mxu0 0
  %75 = vmatprep.subr.bf16.mxu0 0
  %76 = vmatpush1.bf16.msra.mxu0 0
  %77 = vmatprep.mubr.bf16.mxu0 0
  %78 = vmatmul.mubr.bf16.gmra.mrb[0].mxu0 %v27
  %v79 = vpop.f32.mrb[0].mxu0
  %v80 = vadd.f32 0.0, %v79
  %v81 = vpop.f32.mrb[0].mxu0
  %v82 = vpop.f32.mrb[0].mxu0
  %v83 = vadd.f32 0.0, %v82
  %v84 = vpop.f32.mrb[0].mxu0
  %85 = vmatprep.mubr.bf16.mxu0 0
  %86 = vmatmul.mubr.bf16.gmra.mrb[0].mxu0 %v30
  %v87 = vpop.f32.mrb[0].mxu0
  %v88 = vadd.f32 0.0, %v87
  %v89 = vpop.f32.mrb[0].mxu0
  %v90 = vpop.f32.mrb[0].mxu0
  %v91 = vadd.f32 0.0, %v90
  %v92 = vpop.f32.mrb[0].mxu0
  %93 = vmatprep.mubr.bf16.mxu0 0
  %94 = vmatmul.mubr.bf16.gmra.mrb[0].mxu0 %v33
  %v95 = vpop.f32.mrb[0].mxu0
  %v96 = vadd.f32 0.0, %v95
  %v97 = vpop.f32.mrb[0].mxu0
  %v98 = vpop.f32.mrb[0].mxu0
  %v99 = vadd.f32 0.0, %v98
  %v100 = vpop.f32.mrb[0].mxu0
  %101 = vmatprep.mubr.bf16.mxu0 0
  %102 = vmatmul.mubr.bf16.gmra.mrb[0].mxu0 %v36
  %v103 = vpop.f32.mrb[0].mxu0
  %v104 = vadd.f32 0.0, %v103
  %v105 = vpop.f32.mrb[0].mxu0
  %v106 = vpop.f32.mrb[0].mxu0
  %v107 = vadd.f32 0.0, %v106
  %v108 = vpop.f32.mrb[0].mxu0
  %109 = vdwg.mxu0
  %v110 = vmax.f32 %v80, 0.0
  %v111 = vmax.f32 %v83, 0.0
  %v112 = vmax.f32 %v88, 0.0
  %v113 = vmax.f32 %v91, 0.0
  %v114 = vmax.f32 %v96, 0.0
  %v115 = vmax.f32 %v99, 0.0
  %v116 = vmax.f32 %v104, 0.0
  %v117 = vmax.f32 %v107, 0.0
  %vm118 = vcmask 130048
  %119 = vst.msk [vmem:[%s2] sm:$0xff] %vm118, %v110
  %120 = vst.msk [vmem:[%s2 + $0x8] sm:$0xff] %vm118, %v111
  %121 = vst.msk [vmem:[%s2 + $0x10] sm:$0xff] %vm118, %v112
  %122 = vst.msk [vmem:[%s2 + $0x18] sm:$0xff] %vm118, %v113
  %123 = vst.msk [vmem:[%s2 + $0x20] sm:$0xff] %vm118, %v114
  %124 = vst.msk [vmem:[%s2 + $0x28] sm:$0xff] %vm118, %v115
  %125 = vst.msk [vmem:[%s2 + $0x30] sm:$0xff] %vm118, %v116
  %126 = vst.msk [vmem:[%s2 + $0x38] sm:$0xff] %vm118, %v117
  // Predicated region
  $region10: #{tpu_custom_call.1} parent=0 // pred_check
    _
  $region11: #{tpu_custom_call.1} parent=0 // pred_check_branch
    %128 = sbr.rel (0) target = $region13
  $region12: #{tpu_custom_call.1} parent=0 // pred_region
    _
  $region13: #{tpu_custom_call.1} parent=0 // pred_fallthru
    _
  // Predicated region
  $region14: #{tpu_custom_call.1} parent=0 // pred_check
    _
  $region15: #{tpu_custom_call.1} parent=0 // pred_check_branch
    %130 = sbr.rel (0) target = $region17
  $region16: #{tpu_custom_call.1} parent=0 // pred_region
    _
  $region17: #{tpu_custom_call.1} parent=0 // pred_fallthru
    _

</llo_original>
